<compile_context>
chip_gen: v7x
topology: tpu7x:2x2x1
jax: 0.10.0
libtpu: 0.0.40
codegen_flags: <defaults>
</compile_context>

<pallas_src>
import functools

import jax
import jax.numpy as jnp
from jax import lax
from jax.experimental import pallas as pl
from jax.experimental.pallas import tpu as pltpu


def _round_up(v, m):
    return ((v + m - 1) // m) * m


_VMEM_LIMIT = 32 * 1024 * 1024    # safe scoped-VMEM request on v5e / v6e / v7x
_VMEM_BUDGET = 20 * 1024 * 1024   # target working set (headroom on every gen)


# ----------------------------------------------------------------------------
# AvgPool2d(kernel_size=2, stride=2)
# ----------------------------------------------------------------------------
def _avgpool_kernel(presum, wc, x_ref, a_ref, o_ref):
    # x_ref: (rt, Kin)   a_ref: (Kin or Wc, G*Wo) constant, resident
    # o_ref: (rt, G*Wo)
    x = x_ref[...]
    if presum:                       # static Python branch (G == 1, Wo >= 128)
        x = x[:, :wc] + x[:, wc:]    # vertical pair pre-sum on VPU: halves GEMM K
    o_ref[...] = jnp.dot(x, a_ref[...],
                         preferred_element_type=jnp.float32).astype(o_ref.dtype)


def avg_pool2d_downsample(x):
    """AvgPool2d(kernel_size=2, stride=2) on NCHW input."""
    N, C, H, W = x.shape
    Ho, Wo = H // 2, W // 2
    Hc, Wc = 2 * Ho, 2 * Wo
    if (Hc, Wc) != (H, W):           # odd H/W: PyTorch floor behaviour
        x = x[:, :, :Hc, :Wc]

    dt = x.dtype
    isz = jnp.dtype(dt).itemsize

    # Pack G output rows per kernel row so the output's last dim is lane-dense.
    if Wo >= 128:
        G, presum = 1, True
    else:
        presum = False
        divisors = [d for d in range(1, Ho + 1) if Ho % d == 0]
        ok = [d for d in divisors if 2 * d * Wc * d * Wo * isz <= 4 * 1024 * 1024]
        dense = [d for d in ok if d * Wo >= 128]
        G = dense[0] if dense else (ok[-1] if ok else 1)

    rows = (N * C * Ho) // G
    Kin = 2 * G * Wc
    x2 = x.reshape(rows, Kin)        # contiguous -> free reshape, no copy

    # Constant pooling matrix with the 0.25 scale folded in.
    if presum:
        col = jnp.arange(Wc)
        ox = jnp.arange(Wo)
        pool = jnp.where(col[:, None] // 2 == ox[None, :], 0.25, 0.0)
    else:
        i = jnp.arange(Kin)
        r, col = i // Wc, i % Wc
        j = jnp.arange(G * Wo)
        g, ox = j // Wo, j % Wo
        pool = jnp.where((r[:, None] // 2 == g[None, :])
                         & (col[:, None] // 2 == ox[None, :]), 0.25, 0.0)
    pool = pool.astype(dt)

    # Big row tiles: this path is pure HBM roofline (per-step overhead ~0.35us).
    blk_budget = 8 * 1024 * 1024
    rt = max(16, (blk_budget // max(1, Kin * isz)) // 16 * 16)
    rt = min(rt, (rows // 8) * 8) if rows >= 8 else rows

    out = pl.pallas_call(
        functools.partial(_avgpool_kernel, presum, Wc),
        out_shape=jax.ShapeDtypeStruct((rows, G * Wo), dt),
        grid=(pl.cdiv(rows, rt),),
        in_specs=[
            pl.BlockSpec((rt, Kin), lambda i: (i, 0)),
            pl.BlockSpec(pool.shape, lambda i: (0, 0)),     # resident constant
        ],
        out_specs=pl.BlockSpec((rt, G * Wo), lambda i: (i, 0)),
        compiler_params=pltpu.CompilerParams(
            dimension_semantics=("parallel",),
            vmem_limit_bytes=_VMEM_LIMIT),
    )(x2, pool)
    return out.reshape(N, C, Ho, Wo)


# ----------------------------------------------------------------------------
# Conv2d(Cin, Cout, 3, stride=2) : space-to-depth + in-kernel 4-tap matmuls
# ----------------------------------------------------------------------------
def _conv_kernel(offsets, xm_ref, xh_ref, w_ref, b_ref, o_ref, acc_ref, xcat_ref):
    # xm_ref: (1, c4t, tm) main activation panel    xh_ref: (1, c4t, hb) halo
    # w_ref : (4, cot, c4t) tap weight matrices     b_ref : (cot, 1) f32 bias
    # o_ref : (1, cot, tm)                          acc_ref: (cot, tm) f32
    # xcat_ref: (c4t, tm + hb) scratch holding [main | halo]
    k = pl.program_id(3)
    tm = xm_ref.shape[2]

    @pl.when(k == 0)
    def _init():
        acc_ref[...] = jnp.zeros_like(acc_ref)

    xcat_ref[:, :tm] = xm_ref[0]
    xcat_ref[:, tm:] = xh_ref[0]
    for t, off in enumerate(offsets):          # 4 static taps: 0, 1, Ws, Ws+1
        acc_ref[...] += jnp.dot(w_ref[t], xcat_ref[:, off:off + tm],
                                preferred_element_type=jnp.float32)

    @pl.when(k == pl.num_programs(3) - 1)
    def _finalize():
        o_ref[0] = (acc_ref[...] + b_ref[...].astype(jnp.float32)).astype(o_ref.dtype)


def conv2d_stride2_downsample(x, weight, bias, padding):
    """Conv2d(Cin, Cout, 3, stride=2, padding=padding) on NCHW input."""
    N, Cin, H, W = x.shape
    Cout = weight.shape[0]
    dt = x.dtype
    isz = jnp.dtype(dt).itemsize

    if padding == 0:
        # matches F.pad(hidden_states, (0, 1, 0, 1)) in the PyTorch forward
        xp = jnp.pad(x, ((0, 0), (0, 0), (0, 1), (0, 1)))
    else:
        xp = jnp.pad(x, ((0, 0), (0, 0), (padding, padding), (padding, padding)))
    Hp, Wp = xp.shape[2], xp.shape[3]
    Ho, Wo = (Hp - 3) // 2 + 1, (Wp - 3) // 2 + 1
    Hs, Ws = Ho + 1, Wo + 1

    # ---- space-to-depth: one ~1x copy, no 9-tap im2col ever touches HBM ----
    xpe = jnp.pad(xp, ((0, 0), (0, 0), (0, 2 * Hs - Hp), (0, 2 * Ws - Wp)))
    C4 = 4 * Cin
    zs = (xpe.reshape(N, Cin, Hs, 2, Ws, 2)
             .transpose(0, 3, 5, 1, 2, 4)
             .reshape(N, C4, Hs * Ws))                    # (N, 4*Cin, Hs*Ws)

    # 3x3/stride-2 over xp == 2x2/stride-1 over zs; 4 tap matrices over C4.
    w4 = (jnp.pad(weight, ((0, 0), (0, 0), (0, 1), (0, 1)))
             .reshape(Cout, Cin, 2, 2, 2, 2)
             .transpose(2, 4, 0, 3, 5, 1)
             .reshape(4, Cout, C4)).astype(dt)            # MXU fed in act dtype

    Mflat = Ho * Ws
    C4p = _round_up(C4, 128)
    Cp = _round_up(Cout, 128)                 # >=128: keep the MXU / stores fed
    hb = _round_up(Ws + 1, 128)               # halo covers max tap offset Ws+1

    # ---- tile selection: minimize M padding, then fit a cross-gen VMEM budget
    tm_cap = _round_up(min(max(Mflat, hb), 1024), hb)
    tm, Mp = hb, _round_up(Mflat, hb)
    for cand in range(hb, tm_cap + 1, hb):
        mp = _round_up(Mflat, cand)
        if mp < Mp or (mp == Mp and cand > tm):
            tm, Mp = cand, mp

    c4t_opts = [d for d in range(min(C4p, 1024), 127, -128) if C4p % d == 0]
    cot_opts = [d for d in range(min(Cp, 1024), 127, -128) if Cp % d == 0]
    c4t, cot = c4t_opts[0], cot_opts[0]       # cot = Cp when it fits -> j axis = 1

    def footprint(tm_, c4t_, cot_):
        return (2 * c4t_ * tm_ * isz + 2 * c4t_ * hb * isz
                + 2 * 4 * cot_ * c4t_ * isz + 2 * cot_ * tm_ * isz
                + cot_ * tm_ * 4 + c4t_ * (tm_ + hb) * isz + 2 * cot_ * 128 * 4)

    ki = ci = 0
    while footprint(tm, c4t, cot) > _VMEM_BUDGET:
        if ki + 1 < len(c4t_opts):
            ki += 1
            c4t = c4t_opts[ki]
        elif ci + 1 < len(cot_opts):
            ci += 1
            cot = cot_opts[ci]
        elif tm > hb:
            tm = max(hb, (tm // hb // 2) * hb)
            Mp = _round_up(Mflat, tm)
        else:
            break

    L = Mp + hb                                # extra zero tail for the halo view
    zsp = jnp.pad(zs, ((0, 0), (0, C4p - C4), (0, L - Hs * Ws)))
    w4p = jnp.pad(w4, ((0, 0), (0, Cp - Cout), (0, C4p - C4)))
    bp = jnp.pad(bias.astype(jnp.float32), (0, Cp - Cout)).reshape(Cp, 1)

    r = tm // hb
    offsets = (0, 1, Ws, Ws + 1)
    grid = (N, Cp // cot, Mp // tm, C4p // c4t)

    out = pl.pallas_call(
        functools.partial(_conv_kernel, offsets),
        out_shape=jax.ShapeDtypeStruct((N, Cp, Mp), dt),
        grid=grid,
        in_specs=[
            pl.BlockSpec((1, c4t, tm), lambda n, j, m, k: (n, k, m)),
            pl.BlockSpec((1, c4t, hb), lambda n, j, m, k: (n, k, (m + 1) * r)),
            pl.BlockSpec((4, cot, c4t), lambda n, j, m, k: (0, j, k)),
            pl.BlockSpec((cot, 1), lambda n, j, m, k: (j, 0)),
        ],
        out_specs=pl.BlockSpec((1, cot, tm), lambda n, j, m, k: (n, j, m)),
        scratch_shapes=[pltpu.VMEM((cot, tm), jnp.float32),
                        pltpu.VMEM((c4t, tm + hb), dt)],
        compiler_params=pltpu.CompilerParams(
            dimension_semantics=("parallel", "parallel", "parallel", "arbitrary"),
            vmem_limit_bytes=_VMEM_LIMIT),
    )(zsp, zsp, w4p, bp)

    # drop padded Cout rows, garbage columns (x >= Wo) and padded M tail
    out = out[:, :Cout, :Mflat].reshape(N, Cout, Ho, Ws)[:, :, :, :Wo]
    return out


# ----------------------------------------------------------------------------
# Module-equivalent wrapper
# ----------------------------------------------------------------------------
class Downsample2D:
    def __init__(self, channels, use_conv=False, out_channels=None, padding=1,
                 name='conv', key=None):
        self.channels = channels
        self.out_channels = out_channels or channels
        self.use_conv = use_conv
        self.padding = padding
        self.name = name
        if use_conv:
            # deterministic synthetic init (PyTorch-style uniform bounds)
            key = jax.random.PRNGKey(42) if key is None else key
            kw, kb = jax.random.split(key)
            fan_in = channels * 3 * 3
            bound = 1.0 / (fan_in ** 0.5)
            self.weight = jax.random.uniform(
                kw, (self.out_channels, channels, 3, 3), jnp.float32, -bound, bound)
            self.bias = jax.random.uniform(
                kb, (self.out_channels,), jnp.float32, -bound, bound)
        else:
            assert self.channels == self.out_channels
            self.weight = None
            self.bias = None

    def __call__(self, hidden_states):
        assert hidden_states.shape[1] == self.channels
        if self.use_conv:
            return conv2d_stride2_downsample(
                hidden_states, self.weight, self.bias, self.padding)
        return avg_pool2d_downsample(hidden_states)


# ----------------------------------------------------------------------------
# References (pure JAX) for correctness checks
# ----------------------------------------------------------------------------
def _ref_avgpool(x):
    s = lax.reduce_window(x, 0.0, lax.add, (1, 1, 2, 2), (1, 1, 2, 2), 'VALID')
    return s * 0.25


def _ref_conv(x, w, b, padding):
    if padding == 0:
        x = jnp.pad(x, ((0, 0), (0, 0), (0, 1), (0, 1)))
        pad = ((0, 0), (0, 0))
    else:
        pad = ((padding, padding), (padding, padding))
    y = lax.conv_general_dilated(
        x, w, window_strides=(2, 2), padding=pad,
        dimension_numbers=('NCHW', 'OIHW', 'NCHW'),
        precision=lax.Precision.HIGHEST)
    return y + b[None, :, None, None]


if __name__ == "__main__":
    key = jax.random.PRNGKey(0)
    x = jax.random.normal(key, (2, 4, 16, 16), dtype=jnp.float32)

    # Path 1: use_conv=False -> AvgPool2d(2, 2)
    pool_mod = Downsample2D(channels=4, use_conv=False)
    y_pool = jax.block_until_ready(pool_mod(x))
    assert y_pool.shape == (2, 4, 8, 8), y_pool.shape
    assert jnp.allclose(y_pool, _ref_avgpool(x), atol=1e-5, rtol=1e-5)

    # Path 2: use_conv=True, padding=1 -> Conv2d(4, 8, 3, stride=2, padding=1)
    conv_mod = Downsample2D(channels=4, use_conv=True, out_channels=8, padding=1)
    y_conv = jax.block_until_ready(conv_mod(x))
    assert y_conv.shape == (2, 8, 8, 8), y_conv.shape
    ref_conv = _ref_conv(x, conv_mod.weight, conv_mod.bias, 1)
    assert jnp.allclose(y_conv, ref_conv, atol=2e-4, rtol=2e-4)

    # Path 3: use_conv=True, padding=0 -> F.pad((0,1,0,1)) + Conv2d(4, 8, 3, stride=2)
    conv_mod0 = Downsample2D(channels=4, use_conv=True, out_channels=8, padding=0)
    y_conv0 = jax.block_until_ready(conv_mod0(x))
    assert y_conv0.shape == (2, 8, 8, 8), y_conv0.shape
    ref_conv0 = _ref_conv(x, conv_mod0.weight, conv_mod0.bias, 0)
    assert jnp.allclose(y_conv0, ref_conv0, atol=2e-4, rtol=2e-4)

    print("KERNEL_OK")
</pallas_src>

<mosaic_0001>
module attributes {stable_mosaic.version = 11 : i64} {
  func.func @_avgpool_kernel(%arg0: i32, %arg1: memref<8x256xf32, #tpu.memory_space<vmem>>, %arg2: memref<256x64xf32, #tpu.memory_space<vmem>>, %arg3: memref<8x64xf32, #tpu.memory_space<vmem>>) attributes {dimension_semantics = [#tpu.dimension_semantics<parallel>], iteration_bounds = array<i64: 1>, scalar_prefetch = 0 : i64, scratch_operands = 0 : i64, tpu.core_type = #tpu.core_type<tc>, window_params = [{transform_indices = @transform_0, window_bounds = array<i64: 8, 256>}, {pipeline_mode = #tpu.pipeline_mode<synchronous>, transform_indices = @transform_1, window_bounds = array<i64: 256, 64>}, {transform_indices = @transform_2, window_bounds = array<i64: 8, 64>}]} {
    %c0 = arith.constant 0 : index
    %c0_0 = arith.constant 0 : index
    %0 = vector.load %arg1[%c0, %c0_0] : memref<8x256xf32, #tpu.memory_space<vmem>>, vector<8x256xf32>
    %c0_1 = arith.constant 0 : index
    %c0_2 = arith.constant 0 : index
    %1 = vector.load %arg2[%c0_1, %c0_2] : memref<256x64xf32, #tpu.memory_space<vmem>>, vector<256x64xf32>
    %cst = arith.constant dense<0.000000e+00> : vector<8x64xf32>
    %2 = tpu.matmul %0, %1, %cst {dimension_numbers = #tpu.dot_dimension_numbers<[1], [0], [0], [1], [0, 0, 1, 1], [], []>} : vector<8x256xf32>, vector<256x64xf32>, vector<8x64xf32> -> vector<8x64xf32>
    %c0_3 = arith.constant 0 : index
    %c0_4 = arith.constant 0 : index
    %3 = vector.load %arg3[%c0_3, %c0_4] : memref<8x64xf32, #tpu.memory_space<vmem>>, vector<8x64xf32>
    tpu.vector_store %arg3[%c0_3, %c0_4], %2 {strides = array<i32>} : memref<8x64xf32, #tpu.memory_space<vmem>>, vector<8x64xf32>,
    return
  }
  func.func @transform_0(%arg0: i32) -> (i32, i32) {
    %c0_i32 = arith.constant 0 : i32
    %c0_i32_0 = arith.constant 0 : i32
    return %arg0, %c0_i32 : i32, i32
  }
  func.func @transform_1(%arg0: i32) -> (i32, i32) {
    %c0_i32 = arith.constant 0 : i32
    %c0_i32_0 = arith.constant 0 : i32
    %c0_i32_1 = arith.constant 0 : i32
    return %c0_i32, %c0_i32_0 : i32, i32
  }
  func.func @transform_2(%arg0: i32) -> (i32, i32) {
    %c0_i32 = arith.constant 0 : i32
    %c0_i32_0 = arith.constant 0 : i32
    return %arg0, %c0_i32 : i32, i32
  }
}

</mosaic_0001>

<llo_original>
// kernel: tpu_custom_call.1
$region0: #{tpu_custom_call.1}
  #allocation0 [shape = 'u32[]', space=smem, size = 0x4, offset = 0x4, fixed_abs, tag = 'smem constant byte address 0x4 - core index']
  #allocation1 [shape = 'u32[144,128]{1,0:T(1,128)}', space=vmem, size = 0x12000, scoped, tag = 'internal scratch']
  %s0 = inlined_call_operand.vmem [shape: f32[8,256], index: 0, kind: input, shape index: {}]
  %s1 = inlined_call_operand.vmem [shape: f32[256,64], index: 1, kind: input, shape index: {}]
  %s2 = inlined_call_operand.hbm [shape: f32[8,64], index: 2, kind: output, shape index: {}]
  %s3 = sld [smem:[#allocation0]]
  $region18: #{tpu_custom_call.1} parent=0
    _
  %s5 = ssub.s32 1, %s3
  %s6 = scalar_select 0, %s5, %s3
  $region1: #{tpu_custom_call.1} parent=0
    #allocation2 [shape = 'u8[4096]{0}', space=vmem, size = 0x1000, scoped, tag = 'output window, operand 0, single buffered']
    #allocation3 [shape = 's32[1]{0}', space=sflag, size = 0x4, scoped, tag = 'scoped memory for tpu_custom_call.1']
    %7 = vsyncpa [#allocation3], 0
    // Predicated region
    $region2: #{tpu_custom_call.1} parent=1 // pred_check
      _
    $region3: #{tpu_custom_call.1} parent=1 // pred_check_branch
      %9 = sbr.rel (0) target = $region5
    $region4: #{tpu_custom_call.1} parent=1 // pred_region
      _
    $region5: #{tpu_custom_call.1} parent=1 // pred_fallthru
      _
    // Predicated region
    $region6: #{tpu_custom_call.1} parent=1 // pred_check
      _
    $region7: #{tpu_custom_call.1} parent=1 // pred_check_branch
      %11 = sbr.rel (0) target = $region9
    $region8: #{tpu_custom_call.1} parent=1 // pred_region
      _
    $region9: #{tpu_custom_call.1} parent=1 // pred_fallthru
      _
    %v12 = vld [vmem:[%s0] sm:$0xff]
    %v13 = vld [vmem:[%s0 + $0x8] sm:$0xff]
    %v14 = vld [vmem:[%s1] sm:$0xff]
    %v15 = vld [vmem:[%s1 + $0x8] sm:$0xff]
    %v16 = vld [vmem:[%s1 + $0x10] sm:$0xff]
    %v17 = vld [vmem:[%s1 + $0x18] sm:$0xff]
    %v18 = vld [vmem:[%s1 + $0x20] sm:$0xff]
    %v19 = vld [vmem:[%s1 + $0x28] sm:$0xff]
    %v20 = vld [vmem:[%s1 + $0x30] sm:$0xff]
    %v21 = vld [vmem:[%s1 + $0x38] sm:$0xff]
    %v22 = vld [vmem:[%s1 + $0x40] sm:$0xff]
    %v23 = vld [vmem:[%s1 + $0x48] sm:$0xff]
    %v24 = vld [vmem:[%s1 + $0x50] sm:$0xff]
    %v25 = vld [vmem:[%s1 + $0x58] sm:$0xff]
    %v26 = vld [vmem:[%s1 + $0x60] sm:$0xff]
    %v27 = vld [vmem:[%s1 + $0x68] sm:$0xff]
    %v28 = vld [vmem:[%s1 + $0x70] sm:$0xff]
    %v29 = vld [vmem:[%s1 + $0x78] sm:$0xff]
    %v30 = vld [vmem:[%s1 + $0x80] sm:$0xff]
    %v31 = vld [vmem:[%s1 + $0x88] sm:$0xff]
    %v32 = vld [vmem:[%s1 + $0x90] sm:$0xff]
    %v33 = vld [vmem:[%s1 + $0x98] sm:$0xff]
    %v34 = vld [vmem:[%s1 + $0xa0] sm:$0xff]
    %v35 = vld [vmem:[%s1 + $0xa8] sm:$0xff]
    %v36 = vld [vmem:[%s1 + $0xb0] sm:$0xff]
    %v37 = vld [vmem:[%s1 + $0xb8] sm:$0xff]
    %v38 = vld [vmem:[%s1 + $0xc0] sm:$0xff]
    %v39 = vld [vmem:[%s1 + $0xc8] sm:$0xff]
    %v40 = vld [vmem:[%s1 + $0xd0] sm:$0xff]
    %v41 = vld [vmem:[%s1 + $0xd8] sm:$0xff]
    %v42 = vld [vmem:[%s1 + $0xe0] sm:$0xff]
    %v43 = vld [vmem:[%s1 + $0xe8] sm:$0xff]
    %v44 = vld [vmem:[%s1 + $0xf0] sm:$0xff]
    %v45 = vld [vmem:[%s1 + $0xf8] sm:$0xff]
    %46 = vmatprep.subr.mxu0 0.0
    %47 = vmatpush1.msra.mxu0 %v14
    %48 = vmatprep.subr.mxu0 0.0
    %49 = vmatpush1.msra.mxu0 %v15
    %50 = vmatprep.subr.mxu0 0.0
    %51 = vmatpush1.msra.mxu0 %v16
    %52 = vmatprep.subr.mxu0 0.0
    %53 = vmatpush1.msra.mxu0 %v17
    %54 = vmatprep.subr.mxu0 0.0
    %55 = vmatpush1.msra.mxu0 %v18
    %56 = vmatprep.subr.mxu0 0.0
    %57 = vmatpush1.msra.mxu0 %v19
    %58 = vmatprep.subr.mxu0 0.0
    %59 = vmatpush1.msra.mxu0 %v20
    %60 = vmatprep.subr.mxu0 0.0
    %61 = vmatpush1.msra.mxu0 %v21
    %62 = vmatprep.subr.mxu0 0.0
    %63 = vmatpush1.msra.mxu0 %v22
    %64 = vmatprep.subr.mxu0 0.0
    %65 = vmatpush1.msra.mxu0 %v23
    %66 = vmatprep.subr.mxu0 0.0
    %67 = vmatpush1.msra.mxu0 %v24
    %68 = vmatprep.subr.mxu0 0.0
    %69 = vmatpush1.msra.mxu0 %v25
    %70 = vmatprep.subr.mxu0 0.0
    %71 = vmatpush1.msra.mxu0 %v26
    %72 = vmatprep.subr.mxu0 0.0
    %73 = vmatpush1.msra.mxu0 %v27
    %74 = vmatprep.subr.mxu0 0.0
    %75 = vmatpush1.msra.mxu0 %v28
    %76 = vmatprep.subr.mxu0 0.0
    %77 = vmatpush1.msra.mxu0 %v29
    %78 = vmatprep.subr.mxu0 0.0
    %79 = vmatpush1.msra.mxu0 %v30
    %80 = vmatprep.subr.mxu0 0.0
    %81 = vmatpush1.msra.mxu0 %v31
    %82 = vmatprep.subr.mxu0 0.0
    %83 = vmatpush1.msra.mxu0 %v32
    %84 = vmatprep.subr.mxu0 0.0
    %85 = vmatpush1.msra.mxu0 %v33
    %86 = vmatprep.subr.mxu0 0.0
    %87 = vmatpush1.msra.mxu0 %v34
    %88 = vmatprep.subr.mxu0 0.0
    %89 = vmatpush1.msra.mxu0 %v35
    %90 = vmatprep.subr.mxu0 0.0
    %91 = vmatpush1.msra.mxu0 %v36
    %92 = vmatprep.subr.mxu0 0.0
    %93 = vmatpush1.msra.mxu0 %v37
    %94 = vmatprep.subr.mxu0 0.0
    %95 = vmatpush1.msra.mxu0 %v38
    %96 = vmatprep.subr.mxu0 0.0
    %97 = vmatpush1.msra.mxu0 %v39
    %98 = vmatprep.subr.mxu0 0.0
    %99 = vmatpush1.msra.mxu0 %v40
    %100 = vmatprep.subr.mxu0 0.0
    %101 = vmatpush1.msra.mxu0 %v41
    %102 = vmatprep.subr.mxu0 0.0
    %103 = vmatpush1.msra.mxu0 %v42
    %104 = vmatprep.subr.mxu0 0.0
    %105 = vmatpush1.msra.mxu0 %v43
    %106 = vmatprep.subr.mxu0 0.0
    %107 = vmatpush1.msra.mxu0 %v44
    %108 = vmatprep.subr.mxu0 0.0
    %109 = vmatpush1.msra.mxu0 %v45
    %110 = vmatprep.mubr.f32.mxu0 %v13
    %111 = vmatmul.mubr.f32.gmra.mrb[0].mxu0 %v12
    %v112 = vpop.f32.mrb[0].mxu0
    %v113 = vadd.f32 0.0, %v112
    %v114 = vpop.f32.mrb[0].mxu0
    %115 = vdwg.mxu0
    %vm116 = vcmask 523264
    %117 = vst.msk [vmem:[#allocation2] sm:$0xff] %vm116, %v113
    // Predicated region
    $region10: #{tpu_custom_call.1} parent=1 // pred_check
      _
    $region11: #{tpu_custom_call.1} parent=1 // pred_check_branch
      %119 = sbr.rel (0) target = $region13
    $region12: #{tpu_custom_call.1} parent=1 // pred_region
      %s121 = ssub.s32 128, 128
      %122 = vsyncadd [#allocation3], %s121
      %s124 = sshll.u32 [#allocation2], 4
      %s125 = int_to_ptr.vmem [resolvable:$true] %s124
      %127 = dma.vmem_to_hbm [thread:$0]  %s125, 128, %s2, [#allocation3]
    $region13: #{tpu_custom_call.1} parent=1 // pred_fallthru
      _
    // Predicated region
    $region14: #{tpu_custom_call.1} parent=1 // pred_check
      _
    $region15: #{tpu_custom_call.1} parent=1 // pred_check_branch
      %129 = sbr.rel (0) target = $region17
    $region16: #{tpu_custom_call.1} parent=1 // pred_region
      %130 = dma.done [#allocation3], 128
    $region17: #{tpu_custom_call.1} parent=1 // pred_fallthru
      _
    %131 = vsyncpa [#allocation3], 1

</llo_original>
